<compile_context>
chip_gen: v6e
topology: v6e:2x2x1
jax: 0.10.0
libtpu: 0.0.40
codegen_flags: <defaults>
</compile_context>

<pallas_src>
import math
import functools

import jax
import jax.numpy as jnp
from jax.experimental import pallas as pl
from jax.experimental.pallas import tpu as pltpu


def _arcface_kernel(logits_ref, labels_ref, target_ref, out_ref, *, scale):
    """y = x * s everywhere, except y = pre-scaled margin target at the label column."""
    tb, tc = logits_ref.shape
    x = logits_ref[...].astype(jnp.float32)

    # Label column relative to this tile's first column: the (tb, tc) iota has
    # no program_id dependence (hoistable across grid steps); the per-step
    # shift lands on the tiny (tb, 1) labels vector instead of a full-tile add.
    lab_rel = labels_ref[...] - pl.program_id(1) * tc            # (tb, 1) i32
    col_ids = jax.lax.broadcasted_iota(jnp.int32, (tb, tc), 1)   # grid-invariant
    mask = col_ids == lab_rel   # one-hot per row; all-false if target not in tile
                                # or label == -1 (ignored row)

    # target_ref holds final_target_logit * s per row (0 for ignored rows;
    # never selected there because the mask is all-false).
    out_ref[...] = jnp.where(mask, target_ref[...], x * scale).astype(out_ref.dtype)


def _round_up(x, m):
    return ((x + m - 1) // m) * m


def arcface_forward(logits, labels, s=64.0, margin=0.5, *,
                    block_b=256, block_c=2048, donate_logits=False):
    """Pallas implementation of ArcFace.forward (returns modified, scaled logits).

    logits: [B, C] float (f32 or bf16), labels: [B] int (-1 = ignore row).
    block_b / block_c are tunable tile sizes (aligned to the (8, 128)
    sublane/lane grid and clamped to the array).  donate_logits=True aliases
    the output onto the input HBM buffer (the input must not be read after).
    """
    B, C = logits.shape

    cos_m = math.cos(margin)
    sin_m = math.sin(margin)
    theta = math.cos(math.pi - margin)
    sinmm = math.sin(math.pi - margin) * margin

    # ---- O(B) preamble: gather target logits, apply margin math, pre-scale.
    # This is B elements of gather + B rows of scalar math -- negligible next
    # to the B*C streaming pass, and it removes ~8 VPU ops/element (plus the
    # EUP sqrt) from the kernel's per-element path.
    labels_i32 = labels.astype(jnp.int32)
    valid = (labels_i32 >= 0)[:, None]                       # (B, 1)
    safe = jnp.where(labels_i32 >= 0, labels_i32, 0)
    t = jnp.take_along_axis(logits, safe[:, None], axis=1).astype(jnp.float32)  # (B,1)
    sin_t = jnp.sqrt(jnp.maximum(1.0 - t * t, 0.0))
    cos_tm = t * cos_m - sin_t * sin_m
    final_t = jnp.where(t > theta, cos_tm, t - sinmm)        # easy_margin = False
    target = jnp.where(valid, final_t * s, 0.0).astype(jnp.float32)  # (B,1), pre-scaled
    labels2d = labels_i32.reshape(B, 1)

    # ---- Tile selection: lane-dense columns (x128), sublane-aligned rows (x8),
    # clamped to the rounded-up array extents (no padding of the data itself).
    tb = min(_round_up(block_b, 8), _round_up(B, 8))
    tc = min(_round_up(block_c, 128), _round_up(C, 128))

    # Megacore guard: v7x has 2 TensorCores; if the whole problem fits in one
    # grid step, split the column (or row) axis so a "parallel" axis has >= 2
    # steps.  No effect on single-TC v5e/v6e.
    if pl.cdiv(B, tb) == 1 and pl.cdiv(C, tc) == 1:
        if C > 128:
            tc = _round_up(pl.cdiv(C, 2), 128)
        elif B > 8:
            tb = _round_up(pl.cdiv(B, 2), 8)

    grid = (pl.cdiv(B, tb), pl.cdiv(C, tc))

    kernel = functools.partial(_arcface_kernel, scale=float(s))

    out = pl.pallas_call(
        kernel,
        out_shape=jax.ShapeDtypeStruct((B, C), logits.dtype),
        grid=grid,
        in_specs=[
            # logits tile — lane-dense, streamed once; ragged edges are handled
            # by Pallas boundary blocks (masked stores), no pad/slice passes.
            pl.BlockSpec((tb, tc), lambda i, j: (i, j)),
            # per-row labels / pre-scaled targets — block index constant across
            # j (innermost axis), so the redundant DMA is skipped between steps.
            pl.BlockSpec((tb, 1), lambda i, j: (i, 0)),
            pl.BlockSpec((tb, 1), lambda i, j: (i, 0)),
        ],
        out_specs=pl.BlockSpec((tb, tc), lambda i, j: (i, j)),
        compiler_params=pltpu.CompilerParams(
            dimension_semantics=("parallel", "parallel"),
            # Explicit headroom: 2 MiB f32 tiles double-buffered in+out ~8 MiB.
            # v5e's scoped default is only 16 MiB; 32 MiB is safe on all gens
            # (v7x: 64 MiB physical / 32 MiB scoped).
            vmem_limit_bytes=32 * 1024 * 1024,
        ),
        input_output_aliases={0: 0} if donate_logits else {},
    )(logits, labels2d, target)

    return out


def _arcface_reference(logits, labels, s=64.0, margin=0.5):
    """Pure-JAX reference mirroring the PyTorch module."""
    cos_m = math.cos(margin)
    sin_m = math.sin(margin)
    theta = math.cos(math.pi - margin)
    sinmm = math.sin(math.pi - margin) * margin

    B, C = logits.shape
    valid = labels != -1
    safe_labels = jnp.where(valid, labels, 0)
    t = logits[jnp.arange(B), safe_labels].astype(jnp.float32)
    sin_t = jnp.sqrt(jnp.maximum(1.0 - t * t, 0.0))
    cos_tm = t * cos_m - sin_t * sin_m
    final_t = jnp.where(t > theta, cos_tm, t - sinmm)
    onehot = (jax.lax.broadcasted_iota(jnp.int32, (B, C), 1)
              == safe_labels[:, None]) & valid[:, None]
    out = jnp.where(onehot, final_t[:, None], logits.astype(jnp.float32))
    return (out * s).astype(logits.dtype)


if __name__ == "__main__":
    key = jax.random.PRNGKey(0)
    k1, k2, k3, k4 = jax.random.split(key, 4)

    # Case 1: tile-aligned shapes (also exercises the megacore 1x1-grid guard).
    B, C = 8, 256
    logits = jax.random.uniform(k1, (B, C), dtype=jnp.float32,
                                minval=-1.0, maxval=1.0)
    labels = jax.random.randint(k2, (B,), 0, C, dtype=jnp.int32)
    labels = labels.at[1].set(-1).at[5].set(-1)   # a couple of ignored rows

    out = arcface_forward(logits, labels)
    jax.block_until_ready(out)
    ref = _arcface_reference(logits, labels)
    assert out.shape == (B, C) and out.dtype == jnp.float32
    assert jnp.allclose(out, ref, atol=1e-5, rtol=1e-5), \
        "mismatch vs reference (aligned)"

    # Case 2: ragged shapes (exercises boundary-block masking, no pad/slice).
    B2, C2 = 6, 200
    logits2 = jax.random.uniform(k3, (B2, C2), dtype=jnp.float32,
                                 minval=-1.0, maxval=1.0)
    labels2 = jax.random.randint(k4, (B2,), 0, C2, dtype=jnp.int32)
    labels2 = labels2.at[0].set(-1)

    out2 = arcface_forward(logits2, labels2)
    jax.block_until_ready(out2)
    ref2 = _arcface_reference(logits2, labels2)
    assert out2.shape == (B2, C2)
    assert jnp.allclose(out2, ref2, atol=1e-5, rtol=1e-5), \
        "mismatch vs reference (ragged)"

    # Case 3: bf16 I/O (halves HBM traffic; compute stays f32 in-kernel).
    out3 = arcface_forward(logits2.astype(jnp.bfloat16), labels2)
    jax.block_until_ready(out3)
    ref3 = _arcface_reference(logits2.astype(jnp.bfloat16), labels2)
    assert out3.dtype == jnp.bfloat16
    assert jnp.allclose(out3.astype(jnp.float32), ref3.astype(jnp.float32),
                        atol=0.5, rtol=2e-2), "mismatch vs reference (bf16)"

    print("KERNEL_OK")
</pallas_src>

<mosaic_0001>
module attributes {stable_mosaic.version = 11 : i64} {
  func.func @_arcface_kernel(%arg0: i32, %arg1: i32, %arg2: memref<8x128xf32, #tpu.memory_space<vmem>>, %arg3: memref<8x1xi32, #tpu.memory_space<vmem>>, %arg4: memref<8x1xf32, #tpu.memory_space<vmem>>, %arg5: memref<8x128xf32, #tpu.memory_space<vmem>>) attributes {dimension_semantics = [#tpu.dimension_semantics<parallel>, #tpu.dimension_semantics<parallel>], iteration_bounds = array<i64: 1, 2>, scalar_prefetch = 0 : i64, scratch_operands = 0 : i64, tpu.core_type = #tpu.core_type<tc>, window_params = [{transform_indices = @transform_0, window_bounds = array<i64: 8, 128>}, {transform_indices = @transform_1, window_bounds = array<i64: 8, 1>}, {transform_indices = @transform_2, window_bounds = array<i64: 8, 1>}, {transform_indices = @transform_3, window_bounds = array<i64: 8, 128>}]} {
    %c0 = arith.constant 0 : index
    %c0_0 = arith.constant 0 : index
    %0 = vector.load %arg2[%c0, %c0_0] : memref<8x128xf32, #tpu.memory_space<vmem>>, vector<8x128xf32>
    %c0_1 = arith.constant 0 : index
    %c0_2 = arith.constant 0 : index
    %1 = vector.load %arg3[%c0_1, %c0_2] : memref<8x1xi32, #tpu.memory_space<vmem>>, vector<8x1xi32>
    %c128_i32 = arith.constant 128 : i32
    %2 = arith.muli %arg1, %c128_i32 : i32
    %3 = vector.broadcast %2 : i32 to vector<8x1xi32>
    %4 = arith.subi %1, %3 : vector<8x1xi32>
    %5 = tpu.iota {dimensions = array<i32: 1>} : vector<8x128xi32>
    %6 = vector.broadcast %4 : vector<8x1xi32> to vector<8x128xi32>
    %7 = arith.cmpi eq, %5, %6 : vector<8x128xi32>
    %c0_3 = arith.constant 0 : index
    %c0_4 = arith.constant 0 : index
    %8 = vector.load %arg4[%c0_3, %c0_4] : memref<8x1xf32, #tpu.memory_space<vmem>>, vector<8x1xf32>
    %cst = arith.constant 6.400000e+01 : f32
    %9 = vector.broadcast %cst : f32 to vector<8x128xf32>
    %10 = arith.mulf %0, %9 : vector<8x128xf32>
    %11 = vector.shape_cast %8 : vector<8x1xf32> to vector<8x1xf32>
    %12 = vector.broadcast %11 : vector<8x1xf32> to vector<8x128xf32>
    %13 = arith.select %7, %12, %10 : vector<8x128xi1>, vector<8x128xf32>
    %c0_5 = arith.constant 0 : index
    %c0_6 = arith.constant 0 : index
    %14 = vector.load %arg5[%c0_5, %c0_6] : memref<8x128xf32, #tpu.memory_space<vmem>>, vector<8x128xf32>
    tpu.vector_store %arg5[%c0_5, %c0_6], %13 {strides = array<i32>} : memref<8x128xf32, #tpu.memory_space<vmem>>, vector<8x128xf32>,
    return
  }
  func.func @transform_0(%arg0: i32, %arg1: i32) -> (i32, i32) {
    %c0_i32 = arith.constant 0 : i32
    return %arg0, %arg1 : i32, i32
  }
  func.func @transform_1(%arg0: i32, %arg1: i32) -> (i32, i32) {
    %c0_i32 = arith.constant 0 : i32
    %c0_i32_0 = arith.constant 0 : i32
    return %arg0, %c0_i32 : i32, i32
  }
  func.func @transform_2(%arg0: i32, %arg1: i32) -> (i32, i32) {
    %c0_i32 = arith.constant 0 : i32
    %c0_i32_0 = arith.constant 0 : i32
    return %arg0, %c0_i32 : i32, i32
  }
  func.func @transform_3(%arg0: i32, %arg1: i32) -> (i32, i32) {
    %c0_i32 = arith.constant 0 : i32
    return %arg0, %arg1 : i32, i32
  }
}

</mosaic_0001>

<llo_original>
// kernel: tpu_custom_call.1
$region0: #{tpu_custom_call.1}
  #allocation0 [shape = 'u32[]', space=smem, size = 0x4, offset = 0x4, fixed_abs, tag = 'smem constant byte address 0x4 - core index']
  #allocation1 [shape = 'u32[144,128]{1,0:T(1,128)}', space=vmem, size = 0x12000, scoped, tag = 'internal scratch']
  %s0 = inlined_call_operand.vmem [shape: f32[8,256], index: 0, kind: input, shape index: {}]
  %s1 = inlined_call_operand.vmem [shape: s32[8,1], index: 1, kind: input, shape index: {}]
  %s2 = inlined_call_operand.vmem [shape: f32[8,1], index: 2, kind: input, shape index: {}]
  %s3 = inlined_call_operand.hbm [shape: f32[8,256], index: 3, kind: output, shape index: {}]
  %s4 = sld [smem:[#allocation0]]
  $region45: #{tpu_custom_call.1} parent=0
    _
  %s6 = ssub.s32 1, %s4
  %s7 = scalar_select 0, %s6, %s4
  $region1: #{tpu_custom_call.1} parent=0
    #allocation2 [shape = 'u8[8192]{0}', space=vmem, size = 0x2000, scoped, tag = 'output window, operand 0']
    #allocation3 [shape = 's32[2]{0}', space=sflag, size = 0x8, scoped, tag = 'scoped memory for tpu_custom_call.1']
    %8 = vsyncpa [#allocation3], 0
    %s9 = scalar_lea.sflag [#allocation3], 1
    %10 = vsyncpa %s9, 0
    loop: start=0, step=1, limit=4
    $region2: #{tpu_custom_call.1} parent=1 // loop_pre_header
      _
    $region3: #{tpu_custom_call.1} parent=1 // loop_header
      %s12 = sphi 0, %s16
      %p13 = scmp.ge.s32.totalorder %s12, 4
      %s19 = sphi 0, %s31
      %s20 = sphi 0, %s27
      %s21 = sphi 0, %s19
      %s22 = sphi 0, %s20
      %s23 = sphi 0, %s21
      %s24 = sphi 0, %s22
      %s36 = sphi 0, %s38
      %s39 = sphi 0, %s36
      %s40 = sphi 0, %s39
      %s56 = sphi 0, %s40
      %s62 = sphi 0, %s64
      %s65 = sphi 0, %s62
      %s66 = sphi 0, %s65
      %s82 = sphi 0, %s66
      %s88 = sphi 0, %s90
      %s91 = sphi 0, %s88
      %s92 = sphi 0, %s91
      %s108 = sphi 0, %s92
      %s116 = sphi 0, %s118
      %s119 = sphi 0, %s116
      %s120 = sphi 0, %s119
      %s136 = sphi 0, %s120
    $region4: #{tpu_custom_call.1} parent=1 // loop_header_branch
      %15 = sbr.rel (%p13) target = $region8
    $region5: #{tpu_custom_call.1} parent=1 // loop_body
      %s17 = ssub.s32 %s12, 1
      %s18 = ssub.s32 %s12, 2
      %s25 = sadd.s32 1, %s20
      %p26 = scmp.ge.s32.totalorder %s25, 2
      %s27 = scalar_select %p26, 0, %s25
      %s28 = sadd.s32 1, %s19
      %s29 = scalar_select %p26, %s28, %s19
      %p30 = scmp.ge.s32.totalorder %s29, 1
      %s31 = scalar_select %p30, 0, %s29
      %s32 = ssub.s32 %s19, %s31
      %s33 = ssub.s32 %s20, %s27
      %s34 = sor.u32 %s32, %s33
      %p35 = scmp.eq.s32.totalorder %s34, 0
      %s37 = sadd.s32 %s36, 1
      %s38 = scalar_select %p35, %s36, %s37
      %p41 = pneg %p35
      %p42 = scmp.eq.s32.totalorder %s12, 1
      %p43 = por %p41, %p42
      %p44 = scmp.ne.s32.totalorder %s36, %s39
      %p45 = scmp.eq.s32.totalorder %s12, 0
      %p46 = por %p44, %p45
      %p47 = scmp.ne.s32.totalorder %s36, %s39
      %p48 = scmp.eq.s32.totalorder %s17, 1
      %p49 = por %p47, %p48
      %p50 = scmp.ne.s32.totalorder %s39, %s40
      %p51 = scmp.eq.s32.totalorder %s17, 0
      %p52 = por %p50, %p51
      %p53 = scmp.ne.s32.totalorder %s39, %s40
      %p54 = scmp.eq.s32.totalorder %s18, 1
      %p55 = por %p53, %p54
      %p57 = scmp.ne.s32.totalorder %s40, %s56
      %p58 = scmp.eq.s32.totalorder %s18, 0
      %p59 = por %p57, %p58
      %s60 = ssub.s32 %s19, %s31
      %p61 = scmp.eq.s32.totalorder %s60, 0
      %s63 = sadd.s32 %s62, 1
      %s64 = scalar_select %p61, %s62, %s63
      %p67 = pneg %p61
      %p68 = scmp.eq.s32.totalorder %s12, 1
      %p69 = por %p67, %p68
      %p70 = scmp.ne.s32.totalorder %s62, %s65
      %p71 = scmp.eq.s32.totalorder %s12, 0
      %p72 = por %p70, %p71
      %p73 = scmp.ne.s32.totalorder %s62, %s65
      %p74 = scmp.eq.s32.totalorder %s17, 1
      %p75 = por %p73, %p74
      %p76 = scmp.ne.s32.totalorder %s65, %s66
      %p77 = scmp.eq.s32.totalorder %s17, 0
      %p78 = por %p76, %p77
      %p79 = scmp.ne.s32.totalorder %s65, %s66
      %p80 = scmp.eq.s32.totalorder %s18, 1
      %p81 = por %p79, %p80
      %p83 = scmp.ne.s32.totalorder %s66, %s82
      %p84 = scmp.eq.s32.totalorder %s18, 0
      %p85 = por %p83, %p84
      %s86 = ssub.s32 %s19, %s31
      %p87 = scmp.eq.s32.totalorder %s86, 0
      %s89 = sadd.s32 %s88, 1
      %s90 = scalar_select %p87, %s88, %s89
      %p93 = pneg %p87
      %p94 = scmp.eq.s32.totalorder %s12, 1
      %p95 = por %p93, %p94
      %p96 = scmp.ne.s32.totalorder %s88, %s91
      %p97 = scmp.eq.s32.totalorder %s12, 0
      %p98 = por %p96, %p97
      %p99 = scmp.ne.s32.totalorder %s88, %s91
      %p100 = scmp.eq.s32.totalorder %s17, 1
      %p101 = por %p99, %p100
      %p102 = scmp.ne.s32.totalorder %s91, %s92
      %p103 = scmp.eq.s32.totalorder %s17, 0
      %p104 = por %p102, %p103
      %p105 = scmp.ne.s32.totalorder %s91, %s92
      %p106 = scmp.eq.s32.totalorder %s18, 1
      %p107 = por %p105, %p106
      %p109 = scmp.ne.s32.totalorder %s92, %s108
      %p110 = scmp.eq.s32.totalorder %s18, 0
      %p111 = por %p109, %p110
      %s112 = ssub.s32 %s19, %s31
      %s113 = ssub.s32 %s20, %s27
      %s114 = sor.u32 %s112, %s113
      %p115 = scmp.eq.s32.totalorder %s114, 0
      %s117 = sadd.s32 %s116, 1
      %s118 = scalar_select %p115, %s116, %s117
      %p121 = pneg %p115
      %p122 = scmp.eq.s32.totalorder %s12, 1
      %p123 = por %p121, %p122
      %p124 = scmp.ne.s32.totalorder %s116, %s119
      %p125 = scmp.eq.s32.totalorder %s12, 0
      %p126 = por %p124, %p125
      %p127 = scmp.ne.s32.totalorder %s116, %s119
      %p128 = scmp.eq.s32.totalorder %s17, 1
      %p129 = por %p127, %p128
      %p130 = scmp.ne.s32.totalorder %s119, %s120
      %p131 = scmp.eq.s32.totalorder %s17, 0
      %p132 = por %p130, %p131
      %p133 = scmp.ne.s32.totalorder %s119, %s120
      %p134 = scmp.eq.s32.totalorder %s18, 1
      %p135 = por %p133, %p134
      %p137 = scmp.ne.s32.totalorder %s120, %s136
      %p138 = scmp.eq.s32.totalorder %s18, 0
      %p139 = por %p137, %p138
      %p140 = scmp.le.s32.totalorder 1, %s12
      %p141 = scmp.lt.s32.totalorder %s12, 3
      %p142 = pnand %p140, %p141
      %p143 = pneg %p142
      // Predicated region
      $region9: #{tpu_custom_call.1} parent=5 // pred_check
        _
      $region10: #{tpu_custom_call.1} parent=5 // pred_check_branch
        %145 = sbr.rel (%p142) target = $region12
      $region11: #{tpu_custom_call.1} parent=5 // pred_region
        %s146 = ssub.s32 %s12, 1
        // Predicated region
        $region13: #{tpu_custom_call.1} parent=11 // pred_check
          %p147 = pneg %p78
        $region14: #{tpu_custom_call.1} parent=11 // pred_check_branch
          %149 = sbr.rel (%p147) target = $region16
        $region15: #{tpu_custom_call.1} parent=11 // pred_region
          %p150 = scmp.lt.s32.totalorder %s21, 0
          %s151 = scalar_select %p150, %s21, 0
          %s152 = smul.addr %s151, 8
          %s153 = scalar_lea.vmem %s1, %s152
        $region16: #{tpu_custom_call.1} parent=11 // pred_fallthru
          _
        // Predicated region
        $region17: #{tpu_custom_call.1} parent=11 // pred_check
          %p154 = pneg %p104
        $region18: #{tpu_custom_call.1} parent=11 // pred_check_branch
          %156 = sbr.rel (%p154) target = $region20
        $region19: #{tpu_custom_call.1} parent=11 // pred_region
          %p157 = scmp.lt.s32.totalorder %s21, 0
          %s158 = scalar_select %p157, %s21, 0
          %s159 = smul.addr %s158, 8
          %s160 = scalar_lea.vmem %s2, %s159
        $region20: #{tpu_custom_call.1} parent=11 // pred_fallthru
          _
      $region12: #{tpu_custom_call.1} parent=5 // pred_fallthru
        _
      %p161 = scmp.lt.s32.totalorder %s12, 2
      // Predicated region
      $region21: #{tpu_custom_call.1} parent=5 // pred_check
        %p162 = pneg %p161
      $region22: #{tpu_custom_call.1} parent=5 // pred_check_branch
        %164 = sbr.rel (%p162) target = $region24
      $region23: #{tpu_custom_call.1} parent=5 // pred_region
        // Predicated region
        $region25: #{tpu_custom_call.1} parent=23 // pred_check
          %p165 = pneg %p46
        $region26: #{tpu_custom_call.1} parent=23 // pred_check_branch
          %167 = sbr.rel (%p165) target = $region28
        $region27: #{tpu_custom_call.1} parent=23 // pred_region
          %p168 = scmp.lt.s32.totalorder %s19, 0
          %s169 = scalar_select %p168, %s19, 0
          %p170 = scmp.lt.s32.totalorder %s20, 1
          %s171 = scalar_select %p170, %s20, 1
          %s172 = smul.addr %s169, 2
          %s173 = sadd.s32 %s171, %s172
          %s174 = smul.addr %s173, 8
          %s175 = scalar_lea.vmem %s0, %s174
        $region28: #{tpu_custom_call.1} parent=23 // pred_fallthru
          _
      $region24: #{tpu_custom_call.1} parent=5 // pred_fallthru
        _
      %p176 = scmp.le.s32.totalorder 1, %s12
      %p177 = scmp.lt.s32.totalorder %s12, 3
      %p178 = pnand %p176, %p177
      %p179 = pneg %p178
      // Predicated region
      $region29: #{tpu_custom_call.1} parent=5 // pred_check
        _
      $region30: #{tpu_custom_call.1} parent=5 // pred_check_branch
        %181 = sbr.rel (%p178) target = $region32
      $region31: #{tpu_custom_call.1} parent=5 // pred_region
        %s182 = ssub.s32 %s12, 1
        %p183 = scmp.lt.s32.totalorder %s21, 0
        %s184 = scalar_select %p183, %s21, 0
        %p185 = scmp.lt.s32.totalorder %s22, 1
        %s186 = scalar_select %p185, %s22, 1
        %s187 = smul.addr %s184, 2
        %s188 = sadd.s32 %s186, %s187
        %s189 = smul.addr %s188, 8
        %s190 = scalar_lea.vmem %s0, %s189
        %p191 = pneg %p52
        %p192 = pneg %p49
        %p193 = scmp.lt.s32.totalorder %s21, 0
        %s194 = scalar_select %p193, %s21, 0
        %s195 = smul.addr %s194, 8
        %s196 = scalar_lea.vmem %s1, %s195
        %p197 = pneg %p78
        %p198 = pneg %p75
        %p199 = scmp.lt.s32.totalorder %s21, 0
        %s200 = scalar_select %p199, %s21, 0
        %s201 = smul.addr %s200, 8
        %s202 = scalar_lea.vmem %s2, %s201
        %p203 = pneg %p104
        %p204 = pneg %p101
        %p205 = pneg %p132
        %p206 = pneg %p129
        %s207 = sand.u32 %s119, 1
        %s208 = scalar_lea.sflag [#allocation3], %s207
        %s209 = sand.u32 %s119, 1
        %s210 = smul.addr %s209, 8
        %s211 = scalar_lea.vmem [#allocation2], %s210
        %p212 = scmp.lt.s32.totalorder %s21, 0
        %s213 = scalar_select %p212, %s21, 0
        %p214 = scmp.lt.s32.totalorder %s22, 1
        %s215 = scalar_select %p214, %s22, 1
        %s216 = smul.addr %s213, 2
        %s217 = sadd.s32 %s215, %s216
        %s218 = smul.addr %s217, 8
        %s219 = scalar_lea.vmem %s0, %s218
        %p220 = scmp.lt.s32.totalorder %s21, 0
        %s221 = scalar_select %p220, %s21, 0
        %s222 = smul.addr %s221, 8
        %s223 = scalar_lea.vmem %s1, %s222
        %p224 = scmp.lt.s32.totalorder %s21, 0
        %s225 = scalar_select %p224, %s21, 0
        %s226 = smul.addr %s225, 8
        %s227 = scalar_lea.vmem %s2, %s226
        %v228 = vld [vmem:[%s219] sm:$0xff]
        %v229 = vld [vmem:[%s223] sm:$0xff]
        %s230 = smul.u32 %s22, 128
        %v231 = vstv %s230
        %v232 = vsub.s32 %v229, %v231
        %v233 = vlaneseq
        %v234 = vand.u32 %v233, 127
        %235 = vset.pattern.permute.xlu0 0
        %236 = vperm.xlu0 %235, %v232
        %v237 = vpop.permute.xlu0 %236
        %vm238 = vcmp.eq.s32.totalorder %v234, %v237
        %v239 = vld [vmem:[%s227] sm:$0xff]
        %v240 = vmul.f32 %v228, 64.0
        %242 = vset.pattern.permute.xlu0 0
        %243 = vperm.xlu0 %242, %v239
        %v244 = vpop.permute.xlu0 %243
        %v246 = vsel %vm238, %v244, %v240
        %247 = vst [vmem:[%s211] sm:$0xff] %v246
        %s248 = sand.u32 %s119, 1
        %s249 = scalar_lea.sflag [#allocation3], %s248
        %s250 = sand.u32 %s119, 1
        %s251 = smul.addr %s250, 8
        %s252 = scalar_lea.vmem [#allocation2], %s251
        // Predicated region
        $region33: #{tpu_custom_call.1} parent=31 // pred_check
          %p253 = pneg %p129
        $region34: #{tpu_custom_call.1} parent=31 // pred_check_branch
          %255 = sbr.rel (%p253) target = $region36
        $region35: #{tpu_custom_call.1} parent=31 // pred_region
          %s257 = ssub.s32 128, 128
          %258 = vsyncadd %s249, %s257
          %s259 = smul.addr %s21, 2
          %s260 = sadd.s32 %s22, %s259
          %s261 = smul.addr %s260, 128
          %s262 = scalar_lea.hbm %s3, %s261
          %s264 = sshll.u32 %s252, 4
          %s265 = int_to_ptr.vmem [resolvable:$true] %s264
          %267 = dma.vmem_to_hbm [thread:$0]  %s265, 128, %s262, %s249
        $region36: #{tpu_custom_call.1} parent=31 // pred_fallthru
          _
      $region32: #{tpu_custom_call.1} parent=5 // pred_fallthru
        _
      %p268 = scmp.le.s32.totalorder 2, %s12
      // Predicated region
      $region37: #{tpu_custom_call.1} parent=5 // pred_check
        %p269 = pneg %p268
      $region38: #{tpu_custom_call.1} parent=5 // pred_check_branch
        %271 = sbr.rel (%p269) target = $region40
      $region39: #{tpu_custom_call.1} parent=5 // pred_region
        %s272 = ssub.s32 %s12, 2
        // Predicated region
        $region41: #{tpu_custom_call.1} parent=39 // pred_check
          %p273 = pneg %p135
        $region42: #{tpu_custom_call.1} parent=39 // pred_check_branch
          %275 = sbr.rel (%p273) target = $region44
        $region43: #{tpu_custom_call.1} parent=39 // pred_region
          %s276 = sand.u32 %s120, 1
          %s277 = scalar_lea.sflag [#allocation3], %s276
          %s278 = sand.u32 %s120, 1
          %s279 = smul.addr %s278, 8
          %s280 = scalar_lea.vmem [#allocation2], %s279
          %281 = dma.done %s277, 128
        $region44: #{tpu_custom_call.1} parent=39 // pred_fallthru
          _
      $region40: #{tpu_custom_call.1} parent=5 // pred_fallthru
        _
    $region6: #{tpu_custom_call.1} parent=1 // loop_footer
      %s16 = sadd.s32 1, %s12
    $region7: #{tpu_custom_call.1} parent=1 // loop_footer_branch
      %11 = sbr.rel target = $region3
    $region8: #{tpu_custom_call.1} parent=1 // loop_exit
      _
    %282 = vsyncpa [#allocation3], 1
    %s283 = scalar_lea.sflag [#allocation3], 1
    %284 = vsyncpa %s283, 1

</llo_original>
